<compile_context>
chip_gen: v7x
topology: tpu7x:2x2x1
jax: 0.10.0
libtpu: 0.0.40
codegen_flags: <defaults>
</compile_context>

<pallas_src>
import jax
import jax.numpy as jnp
from jax.experimental import pallas as pl
from jax.experimental.pallas import tpu as pltpu

_LANES = 128
_SUBLANES = 8


def _make_kernel(tile_rows, blocks_per_split, num_splits, valid_rows_in_edge, ragged):
    def term(mse, var):
        # mse/var + log(var); the global 0.5 factor is folded into the wrapper.
        return mse * pl.reciprocal(var, approx=False) + jnp.log(var)

    def fold(t):
        # (tile_rows, 128) -> (8, 128) with pure vreg adds (no XLU).
        return jnp.sum(t.reshape(-1, _SUBLANES, _LANES), axis=0)

    def kernel(mse_ref, var_ref, out_ref):
        i = pl.program_id(0)
        j = pl.program_id(1)

        @pl.when(j == 0)
        def _():
            out_ref[...] = jnp.zeros_like(out_ref)

        mse = mse_ref[...].astype(jnp.float32)
        var = var_ref[...].astype(jnp.float32)

        if not ragged:
            out_ref[...] += fold(term(mse, var))
        else:
            # Exactly one block in the whole grid is ragged: the last block of
            # the last split. Only that block pays the mask.
            is_edge = jnp.logical_and(i == num_splits - 1, j == blocks_per_split - 1)

            @pl.when(jnp.logical_not(is_edge))
            def _():
                out_ref[...] += fold(term(mse, var))

            @pl.when(is_edge)
            def _():
                row_ids = jax.lax.broadcasted_iota(jnp.int32, (tile_rows, _LANES), 0)
                valid = row_ids < valid_rows_in_edge
                # Mask BEFORE the transcendentals so OOB garbage never reaches
                # log/reciprocal: masked rows contribute exactly 0.
                mse_m = jnp.where(valid, mse, 0.0)
                var_m = jnp.where(valid, var, 1.0)
                out_ref[...] += fold(term(mse_m, var_m))

    return kernel


def mse_with_variance_constraint(mse_value, variance, *, tile_rows=4096):
    """Pallas equivalent of MSEWithVarianceConstraint.forward.

    Accepts arbitrary matching shapes/dtypes; returns a float32 scalar equal to
    torch.mean(mse/(2*var) + 0.5*log(var)) over all elements.
    """
    assert mse_value.shape == variance.shape, "elementwise op expects same shape"
    total = int(mse_value.size)
    assert total > 0

    mse_flat = jnp.ravel(mse_value)
    var_flat = jnp.ravel(variance)

    # Split into a 128-lane-aligned bulk (kernel) and a tiny tail (plain JAX).
    lane_rem = total % _LANES
    bulk_total = total - lane_rem
    rows = bulk_total // _LANES

    if rows < _SUBLANES:
        # Too small for an (8,128)-tiled streaming pass: plain JAX is cheaper.
        m = mse_flat.astype(jnp.float32)
        v = var_flat.astype(jnp.float32)
        return jnp.sum(m / v + jnp.log(v)) / (2.0 * total)

    tail_sum = jnp.float32(0.0)
    if lane_rem:
        m_t = mse_flat[bulk_total:].astype(jnp.float32)
        v_t = var_flat[bulk_total:].astype(jnp.float32)
        tail_sum = jnp.sum(m_t / v_t + jnp.log(v_t))
        # TODO(synk): the bulk slice below may still materialize a copy in XLA
        # for non-128-divisible sizes; a 1D-view kernel with an element-granular
        # edge mask would avoid even that.
        mse_flat = mse_flat[:bulk_total]
        var_flat = var_flat[:bulk_total]

    # Free (copy-less) reshape: bulk_total is a multiple of 128.
    mse2d = mse_flat.reshape(rows, _LANES)
    var2d = var_flat.reshape(rows, _LANES)

    # Tile sizing: big (amortize per-step overhead), multiple of 8, <= rows.
    tile_rows = max(_SUBLANES, (min(tile_rows, rows) // _SUBLANES) * _SUBLANES)

    num_row_blocks = pl.cdiv(rows, tile_rows)
    # 2-way leading split so v7x's two TensorCores can stream concurrently;
    # only when it divides evenly (no duplicate block -> no wasted DMA).
    num_splits = 2 if (num_row_blocks >= 2 and num_row_blocks % 2 == 0) else 1
    blocks_per_split = num_row_blocks // num_splits

    ragged = (rows % tile_rows) != 0
    valid_rows_in_edge = rows - (num_row_blocks - 1) * tile_rows

    def in_map(i, j):
        return (i * blocks_per_split + j, 0)

    itemsize_in = jnp.dtype(mse2d.dtype).itemsize
    out = pl.pallas_call(
        _make_kernel(tile_rows, blocks_per_split, num_splits, valid_rows_in_edge, ragged),
        out_shape=jax.ShapeDtypeStruct((num_splits * _SUBLANES, _LANES), jnp.float32),
        grid_spec=pltpu.PrefetchScalarGridSpec(
            num_scalar_prefetch=0,
            grid=(num_splits, blocks_per_split),
            in_specs=[
                pl.BlockSpec((tile_rows, _LANES), in_map),
                pl.BlockSpec((tile_rows, _LANES), in_map),
            ],
            out_specs=pl.BlockSpec((_SUBLANES, _LANES), lambda i, j: (i, 0)),
        ),
        compiler_params=pltpu.CompilerParams(
            dimension_semantics=("parallel", "arbitrary"),
        ),
        cost_estimate=pl.CostEstimate(
            flops=3 * bulk_total,
            transcendentals=2 * bulk_total,  # log + reciprocal
            bytes_accessed=2 * bulk_total * itemsize_in
            + num_splits * _SUBLANES * _LANES * 4,
        ),
    )(mse2d, var2d)

    # Tiny final reduce; the 0.5 factor is folded into this single divide.
    return (jnp.sum(out) + tail_sum) / (2.0 * total)


if __name__ == "__main__":
    key = jax.random.PRNGKey(0)
    k1, k2 = jax.random.split(key)

    # Small shapes consistent with how the loss is used (per-pixel MSE map with
    # matching per-pixel variance), NCHW-style: (batch=2, channels=4, 16, 16).
    mse_value = jax.random.uniform(k1, (2, 4, 16, 16), jnp.float32, 0.0, 2.0)
    variance = jax.random.uniform(k2, (2, 4, 16, 16), jnp.float32, 0.5, 1.5)

    out = mse_with_variance_constraint(mse_value, variance)
    out = jax.block_until_ready(out)

    # Reference check in plain JAX (same math as the PyTorch module).
    ref = jnp.mean(mse_value / (2.0 * variance) + 0.5 * jnp.log(variance))
    assert jnp.allclose(out, ref, rtol=1e-5, atol=1e-6), (out, ref)

    print("KERNEL_OK")
</pallas_src>

<mosaic_0001>
module attributes {stable_mosaic.version = 11 : i64} {
  func.func @kernel(%arg0: i32, %arg1: i32, %arg2: memref<16x128xf32, #tpu.memory_space<vmem>>, %arg3: memref<16x128xf32, #tpu.memory_space<vmem>>, %arg4: memref<8x128xf32, #tpu.memory_space<vmem>>) attributes {dimension_semantics = [#tpu.dimension_semantics<parallel>, #tpu.dimension_semantics<arbitrary>], iteration_bounds = array<i64: 1, 1>, scalar_prefetch = 0 : i64, scratch_operands = 0 : i64, tpu.core_type = #tpu.core_type<tc>, window_params = [{transform_indices = @transform_0, window_bounds = array<i64: 16, 128>}, {transform_indices = @transform_1, window_bounds = array<i64: 16, 128>}, {transform_indices = @transform_2, window_bounds = array<i64: 8, 128>}]} {
    %c0_i32 = arith.constant 0 : i32
    %0 = arith.cmpi eq, %arg1, %c0_i32 : i32
    %1 = arith.extui %0 : i1 to i32
    %c0_i32_0 = arith.constant 0 : i32
    %2 = arith.cmpi ne, %1, %c0_i32_0 : i32
    scf.if %2 {
      %cst_8 = arith.constant 0.000000e+00 : f32
      %14 = vector.broadcast %cst_8 : f32 to vector<8x128xf32>
      %c0_9 = arith.constant 0 : index
      %c0_10 = arith.constant 0 : index
      %15 = vector.load %arg4[%c0_9, %c0_10] : memref<8x128xf32, #tpu.memory_space<vmem>>, vector<8x128xf32>
      tpu.vector_store %arg4[%c0_9, %c0_10], %14 {strides = array<i32>} : memref<8x128xf32, #tpu.memory_space<vmem>>, vector<8x128xf32>,
    } else {
    }
    %c0 = arith.constant 0 : index
    %c0_1 = arith.constant 0 : index
    %3 = vector.load %arg2[%c0, %c0_1] : memref<16x128xf32, #tpu.memory_space<vmem>>, vector<16x128xf32>
    %c0_2 = arith.constant 0 : index
    %c0_3 = arith.constant 0 : index
    %4 = vector.load %arg3[%c0_2, %c0_3] : memref<16x128xf32, #tpu.memory_space<vmem>>, vector<16x128xf32>
    %c0_4 = arith.constant 0 : index
    %c0_5 = arith.constant 0 : index
    %5 = vector.load %arg4[%c0_4, %c0_5] : memref<8x128xf32, #tpu.memory_space<vmem>>, vector<8x128xf32>
    %6 = tpu.reciprocal %4 : vector<16x128xf32> -> vector<16x128xf32>
    %7 = arith.mulf %3, %6 : vector<16x128xf32>
    %8 = math.log %4 : vector<16x128xf32>
    %9 = arith.addf %7, %8 : vector<16x128xf32>
    %10 = vector.shape_cast %9 : vector<16x128xf32> to vector<2x8x128xf32>
    %cst = arith.constant dense<0.000000e+00> : vector<8x128xf32>
    %11 = vector.multi_reduction <add>, %10, %cst [0] : vector<2x8x128xf32> to vector<8x128xf32>
    %12 = arith.addf %5, %11 : vector<8x128xf32>
    %c0_6 = arith.constant 0 : index
    %c0_7 = arith.constant 0 : index
    %13 = vector.load %arg4[%c0_6, %c0_7] : memref<8x128xf32, #tpu.memory_space<vmem>>, vector<8x128xf32>
    tpu.vector_store %arg4[%c0_6, %c0_7], %12 {strides = array<i32>} : memref<8x128xf32, #tpu.memory_space<vmem>>, vector<8x128xf32>,
    return
  }
  func.func @transform_0(%arg0: i32, %arg1: i32) -> (i32, i32) {
    %c1_i32 = arith.constant 1 : i32
    %0 = arith.muli %arg0, %c1_i32 : i32
    %1 = arith.addi %0, %arg1 : i32
    %c0_i32 = arith.constant 0 : i32
    %c0_i32_0 = arith.constant 0 : i32
    return %1, %c0_i32 : i32, i32
  }
  func.func @transform_1(%arg0: i32, %arg1: i32) -> (i32, i32) {
    %c1_i32 = arith.constant 1 : i32
    %0 = arith.muli %arg0, %c1_i32 : i32
    %1 = arith.addi %0, %arg1 : i32
    %c0_i32 = arith.constant 0 : i32
    %c0_i32_0 = arith.constant 0 : i32
    return %1, %c0_i32 : i32, i32
  }
  func.func @transform_2(%arg0: i32, %arg1: i32) -> (i32, i32) {
    %c0_i32 = arith.constant 0 : i32
    %c0_i32_0 = arith.constant 0 : i32
    return %arg0, %c0_i32 : i32, i32
  }
}

</mosaic_0001>

<llo_original>
// kernel: tpu_custom_call.1
$region0: #{tpu_custom_call.1}
  #allocation0 [shape = 'u32[]', space=smem, size = 0x4, offset = 0x4, fixed_abs, tag = 'smem constant byte address 0x4 - core index']
  #allocation1 [shape = 'u32[144,128]{1,0:T(1,128)}', space=vmem, size = 0x12000, scoped, tag = 'internal scratch']
  %s0 = inlined_call_operand.hbm [shape: f32[16,128], index: 0, kind: input, shape index: {}]
  %s1 = inlined_call_operand.hbm [shape: f32[16,128], index: 1, kind: input, shape index: {}]
  %s2 = inlined_call_operand.hbm [shape: f32[8,128], index: 2, kind: output, shape index: {}]
  %s3 = sld [smem:[#allocation0]]
  $region30: #{tpu_custom_call.1} parent=0
    _
  %s5 = ssub.s32 1, %s3
  %s6 = scalar_select 0, %s5, %s3
  $region1: #{tpu_custom_call.1} parent=0
    #allocation2 [shape = 'u8[8192]{0}', space=vmem, size = 0x2000, scoped, tag = 'input window, operand 0, single buffered']
    #allocation3 [shape = 's32[1]{0}', space=sflag, size = 0x4, scoped, tag = 'scoped memory for tpu_custom_call.1']
    #allocation4 [shape = 's32[1]{0}', space=sflag, size = 0x4, scoped, tag = 'scoped memory for tpu_custom_call.1']
    #allocation5 [shape = 'u8[8192]{0}', space=vmem, size = 0x2000, scoped, tag = 'input window, operand 1, single buffered']
    #allocation6 [shape = 's32[1]{0}', space=sflag, size = 0x4, scoped, tag = 'scoped memory for tpu_custom_call.1']
    #allocation7 [shape = 'u8[4096]{0}', space=vmem, size = 0x1000, scoped, tag = 'output window, operand 0, single buffered']
    %7 = vsyncpa [#allocation3], 0
    %8 = vsyncpa [#allocation6], 0
    %9 = vsyncpa [#allocation4], 0
    // Predicated region
    $region2: #{tpu_custom_call.1} parent=1 // pred_check
      _
    $region3: #{tpu_custom_call.1} parent=1 // pred_check_branch
      %11 = sbr.rel (0) target = $region5
    $region4: #{tpu_custom_call.1} parent=1 // pred_region
      %s12 = sadd.s32 0, 0
      %s13 = smul.u32 2, %s12
      %s15 = ssub.s32 256, 256
      %16 = vsyncadd [#allocation3], %s15
      %s17 = smul.addr %s13, 128
      %s18 = scalar_lea.hbm %s0, %s17
      %s19 = sshll.u32 [#allocation2], 4
      %s20 = int_to_ptr.vmem [resolvable:$true] %s19
      %25 = dma.hbm_to_vmem [thread:$0]  %s18, 256, %s20, [#allocation3], 128, 128, 8
    $region5: #{tpu_custom_call.1} parent=1 // pred_fallthru
      _
    // Predicated region
    $region6: #{tpu_custom_call.1} parent=1 // pred_check
      _
    $region7: #{tpu_custom_call.1} parent=1 // pred_check_branch
      %27 = sbr.rel (0) target = $region9
    $region8: #{tpu_custom_call.1} parent=1 // pred_region
      %s28 = sadd.s32 0, 0
      %s29 = smul.u32 2, %s28
      %s31 = ssub.s32 256, 256
      %32 = vsyncadd [#allocation6], %s31
      %s33 = smul.addr %s29, 128
      %s34 = scalar_lea.hbm %s1, %s33
      %s35 = sshll.u32 [#allocation5], 4
      %s36 = int_to_ptr.vmem [resolvable:$true] %s35
      %41 = dma.hbm_to_vmem [thread:$0]  %s34, 256, %s36, [#allocation6], 128, 128, 8
    $region9: #{tpu_custom_call.1} parent=1 // pred_fallthru
      _
    // Predicated region
    $region10: #{tpu_custom_call.1} parent=1 // pred_check
      _
    $region11: #{tpu_custom_call.1} parent=1 // pred_check_branch
      %43 = sbr.rel (0) target = $region13
    $region12: #{tpu_custom_call.1} parent=1 // pred_region
      %44 = dma.done [#allocation3], 256
    $region13: #{tpu_custom_call.1} parent=1 // pred_fallthru
      _
    // Predicated region
    $region14: #{tpu_custom_call.1} parent=1 // pred_check
      _
    $region15: #{tpu_custom_call.1} parent=1 // pred_check_branch
      %46 = sbr.rel (0) target = $region17
    $region16: #{tpu_custom_call.1} parent=1 // pred_region
      %47 = dma.done [#allocation6], 256
    $region17: #{tpu_custom_call.1} parent=1 // pred_fallthru
      _
    %s48 = sadd.s32 0, 0
    %s49 = smul.u32 2, %s48
    %s50 = sadd.s32 0, 0
    %s51 = smul.u32 2, %s50
    %p52 = scmp.eq.s32.totalorder 0, 0
    // Predicated region
    $region18: #{tpu_custom_call.1} parent=1 // pred_check
      %p53 = pneg %p52
    $region19: #{tpu_custom_call.1} parent=1 // pred_check_branch
      %55 = sbr.rel (%p53) target = $region21
    $region20: #{tpu_custom_call.1} parent=1 // pred_region
      %56 = vst [vmem:[#allocation7] sm:$0xff] 0.0
    $region21: #{tpu_custom_call.1} parent=1 // pred_fallthru
      _
    %v57 = vld [vmem:[#allocation2] sm:$0xff]
    %v58 = vld [vmem:[#allocation2 + $0x8] sm:$0xff]
    %v59 = vld [vmem:[#allocation5] sm:$0xff]
    %v60 = vld [vmem:[#allocation5 + $0x8] sm:$0xff]
    %v61 = vld [vmem:[#allocation7] sm:$0xff]
    %v62 = vrcp.pop %v59
    %v63 = vrcp.pop %v60
    %v64 = vmul.f32 %v57, %v62
    %v65 = vmul.f32 %v58, %v63
    %v66 = vlog2.pop %v59
    %v67 = vmul.f32 %v66, 0.6931472
    %v68 = vlog2.pop %v60
    %v69 = vmul.f32 %v68, 0.6931472
    %v70 = vadd.f32 %v64, %v67
    %v71 = vadd.f32 %v65, %v69
    %v72 = vadd.f32 %v70, %v71
    %v73 = vadd.f32 %v61, %v72
    %74 = vst [vmem:[#allocation7] sm:$0xff] %v73
    // Predicated region
    $region22: #{tpu_custom_call.1} parent=1 // pred_check
      _
    $region23: #{tpu_custom_call.1} parent=1 // pred_check_branch
      %76 = sbr.rel (0) target = $region25
    $region24: #{tpu_custom_call.1} parent=1 // pred_region
      %s78 = ssub.s32 128, 128
      %79 = vsyncadd [#allocation4], %s78
      %s81 = sshll.u32 [#allocation7], 4
      %s82 = int_to_ptr.vmem [resolvable:$true] %s81
      %84 = dma.vmem_to_hbm [thread:$0]  %s82, 128, %s2, [#allocation4]
    $region25: #{tpu_custom_call.1} parent=1 // pred_fallthru
      _
    // Predicated region
    $region26: #{tpu_custom_call.1} parent=1 // pred_check
      _
    $region27: #{tpu_custom_call.1} parent=1 // pred_check_branch
      %86 = sbr.rel (0) target = $region29
    $region28: #{tpu_custom_call.1} parent=1 // pred_region
      %87 = dma.done [#allocation4], 128
    $region29: #{tpu_custom_call.1} parent=1 // pred_fallthru
      _
    %88 = vsyncpa [#allocation3], 1
    %89 = vsyncpa [#allocation6], 1
    %90 = vsyncpa [#allocation4], 1

</llo_original>
